<compile_context>
chip_gen: v7x
topology: tpu7x:2x2x1
jax: 0.10.0
libtpu: 0.0.40
codegen_flags: <defaults>
</compile_context>

<pallas_src>
import jax
import jax.numpy as jnp
import numpy as np
from jax import lax
from jax.experimental import pallas as pl
from jax.experimental.pallas import tpu as pltpu

C_IN = 32
C_OUT = 16
K = 5
PAD = 1                      # ConvTranspose1d padding
EFF_PAD = K - 1 - PAD        # = 3 : equivalent regular-conv zero padding


def conv_transpose1d_tanh(x_ncl, weight, bias, *, batch_block=None):
    """x_ncl: (N, C_in, L). weight: (C_in, C_out, K) (PyTorch ConvTranspose1d layout).
    Returns (N, C_out, L_out), L_out = (L-1)*1 - 2*PAD + K = L + 2."""
    n, c_in, length = x_ncl.shape
    assert c_in == C_IN
    l_out = length - 2 * PAD + K - 1                       # = L + 2

    # Lane-dense (multiple-of-128) padded output width. Also guarantees the
    # circular-roll wrap lanes are zero / land beyond l_out (needs >= L + 3).
    l_out_pad = ((l_out + 127) // 128) * 128
    if l_out_pad < length + EFF_PAD:
        l_out_pad += 128

    # Batch folding: amortize per-grid-step overhead (single TC on v5e/v6e)
    # while keeping >= 2 parallel grid steps when possible (2 TCs on v7x).
    if batch_block is None:
        cap = max(1, n // 2) if n >= 2 else 1
        cap = min(cap, 8)
        batch_block = max(d for d in range(1, cap + 1) if n % d == 0)
    assert n % batch_block == 0
    grid = n // batch_block

    # ConvTranspose weight (C_in, C_out, K) -> flattened regular-conv weight:
    # W2[co, k*C_in + ci] = weight[ci, co, K-1-k]
    w_flip = jnp.flip(weight, axis=2)                      # flip taps
    w2 = jnp.transpose(w_flip, (2, 0, 1)).reshape(K * C_IN, C_OUT)
    w2 = jnp.transpose(w2, (1, 0))                         # (C_OUT, K*C_IN)
    b2 = bias.reshape(C_OUT, 1)

    def kernel(x_ref, w_ref, b_ref, o_ref, xb_ref, lhs_ref):
        # x_ref  : (batch_block, C_IN, L)       NCL-native (L on lanes)
        # w_ref  : (C_OUT, K*C_IN)              tap-flipped, flattened weight
        # b_ref  : (C_OUT, 1)
        # o_ref  : (batch_block, C_OUT, l_out_pad)
        # xb_ref : (C_IN, l_out_pad)  scratch   widened x (zero tail lanes)
        # lhs_ref: (K*C_IN, l_out_pad) scratch  im2col LHS for the fused dot
        #
        # Zero only the static tail lanes of xb. Re-done each step (NOT under
        # program_id==0) because the grid axis is "parallel": each TensorCore
        # only sees a subset of steps, so step-0 init of a per-core scratch is
        # not safe.  This is only (C_IN, l_out_pad - L) lanes -> tiny.
        xb_ref[:, length:] = jnp.zeros((C_IN, l_out_pad - length), xb_ref.dtype)
        w = w_ref[...]                                     # hoisted loads
        bvec = b_ref[...]
        for b in range(batch_block):                       # static unroll
            xb_ref[:, :length] = x_ref[b]                  # lane-aligned store
            xb = xb_ref[...]                               # (C_IN, l_out_pad)
            for k in range(K):
                # Tap-k window of the EFF_PAD-padded input == circular roll of
                # the widened row by (EFF_PAD - k); wrap lanes are zero or land
                # in the sliced-off padding lanes (l_out_pad >= L + 3).
                shift = (EFF_PAD - k) % l_out_pad
                blk = xb if shift == 0 else pltpu.roll(xb, shift=shift, axis=1)
                lhs_ref[k * C_IN:(k + 1) * C_IN, :] = blk
            # Single 160-deep contraction on the MXU, lane-dense result.
            acc = jnp.dot(w, lhs_ref[...],
                          preferred_element_type=jnp.float32)  # (C_OUT, l_out_pad)
            acc = acc + bvec                               # bias broadcast over lanes
            o_ref[b] = jnp.tanh(acc).astype(o_ref.dtype)

    out = pl.pallas_call(
        kernel,
        out_shape=jax.ShapeDtypeStruct((n, C_OUT, l_out_pad), x_ncl.dtype),
        grid_spec=pltpu.PrefetchScalarGridSpec(
            num_scalar_prefetch=0,
            grid=(grid,),
            in_specs=[
                pl.BlockSpec((batch_block, C_IN, length), lambda i: (i, 0, 0)),
                pl.BlockSpec((C_OUT, K * C_IN), lambda i: (0, 0)),
                pl.BlockSpec((C_OUT, 1), lambda i: (0, 0)),
            ],
            out_specs=pl.BlockSpec((batch_block, C_OUT, l_out_pad),
                                   lambda i: (i, 0, 0)),
            scratch_shapes=[
                pltpu.VMEM((C_IN, l_out_pad), jnp.float32),       # widened x
                pltpu.VMEM((K * C_IN, l_out_pad), jnp.float32),   # im2col LHS
            ],
        ),
        compiler_params=pltpu.CompilerParams(
            dimension_semantics=("parallel",),
            vmem_limit_bytes=32 * 1024 * 1024),
    )(x_ncl, w2, b2)
    return out[:, :, :l_out]


def _reference(x_ncl, weight, bias):
    """Pure-JAX reference for ConvTranspose1d(stride=1, padding=PAD) + tanh (NCL out)."""
    n, c_in, length = x_ncl.shape
    l_out = length - 2 * PAD + K - 1
    x_pad = jnp.pad(x_ncl, ((0, 0), (0, 0), (EFF_PAD, EFF_PAD)))
    w_conv = jnp.flip(jnp.transpose(weight, (2, 0, 1)), axis=0)   # (K, C_in, C_out)
    out = jnp.zeros((n, C_OUT, l_out), jnp.float32)
    for k in range(K):
        out = out + jnp.einsum('ncl,co->nol', x_pad[:, :, k:k + l_out], w_conv[k],
                               precision=lax.Precision.HIGHEST)
    return jnp.tanh(out + bias[None, :, None])


if __name__ == "__main__":
    key = jax.random.PRNGKey(0)
    k_x, k_w, k_b = jax.random.split(key, 3)

    # Small shapes consistent with the module: (N, C_in=32, L).
    N, L = 2, 256
    x = jax.random.normal(k_x, (N, C_IN, L), dtype=jnp.float32)

    # Deterministic parameter init (PyTorch ConvTranspose1d shapes):
    # weight (C_in, C_out, K), bias (C_out,)
    fan = C_IN * K
    bound = 1.0 / np.sqrt(fan)
    weight = jax.random.uniform(k_w, (C_IN, C_OUT, K), jnp.float32,
                                minval=-bound, maxval=bound)
    bias = jax.random.uniform(k_b, (C_OUT,), jnp.float32,
                              minval=-bound, maxval=bound)

    out = conv_transpose1d_tanh(x, weight, bias)
    out = jax.block_until_ready(out)

    ref = _reference(x, weight, bias)
    assert out.shape == (N, C_OUT, L + 2), out.shape
    np.testing.assert_allclose(np.asarray(out), np.asarray(ref),
                               rtol=1e-5, atol=1e-5)
    print("KERNEL_OK")
</pallas_src>

<mosaic_0001>
module attributes {stable_mosaic.version = 11 : i64} {
  func.func @kernel(%arg0: i32, %arg1: memref<1x32x256xf32, #tpu.memory_space<vmem>>, %arg2: memref<16x160xf32, #tpu.memory_space<vmem>>, %arg3: memref<16x1xf32, #tpu.memory_space<vmem>>, %arg4: memref<1x16x384xf32, #tpu.memory_space<vmem>>, %arg5: memref<32x384xf32, #tpu.memory_space<vmem>>, %arg6: memref<160x384xf32, #tpu.memory_space<vmem>>) attributes {dimension_semantics = [#tpu.dimension_semantics<parallel>], iteration_bounds = array<i64: 2>, scalar_prefetch = 0 : i64, scratch_operands = 2 : i64, tpu.core_type = #tpu.core_type<tc>, window_params = [{transform_indices = @transform_0, window_bounds = array<i64: 1, 32, 256>}, {pipeline_mode = #tpu.pipeline_mode<synchronous>, transform_indices = @transform_1, window_bounds = array<i64: 16, 160>}, {pipeline_mode = #tpu.pipeline_mode<synchronous>, transform_indices = @transform_2, window_bounds = array<i64: 16, 1>}, {transform_indices = @transform_3, window_bounds = array<i64: 1, 16, 384>}]} {
    %cst = arith.constant 0.000000e+00 : f32
    %0 = vector.broadcast %cst : f32 to vector<32x128xf32>
    %c0 = arith.constant 0 : index
    %c256 = arith.constant 256 : index
    %1 = vector.load %arg5[%c0, %c256] : memref<32x384xf32, #tpu.memory_space<vmem>>, vector<32x128xf32>
    tpu.vector_store %arg5[%c0, %c256], %0 {strides = array<i32>} : memref<32x384xf32, #tpu.memory_space<vmem>>, vector<32x128xf32>,
    %c0_0 = arith.constant 0 : index
    %c0_1 = arith.constant 0 : index
    %2 = vector.load %arg2[%c0_0, %c0_1] : memref<16x160xf32, #tpu.memory_space<vmem>>, vector<16x160xf32>
    %c0_2 = arith.constant 0 : index
    %c0_3 = arith.constant 0 : index
    %3 = vector.load %arg3[%c0_2, %c0_3] : memref<16x1xf32, #tpu.memory_space<vmem>>, vector<16x1xf32>
    %c0_4 = arith.constant 0 : index
    %c0_5 = arith.constant 0 : index
    %c0_6 = arith.constant 0 : index
    %4 = vector.load %arg1[%c0_4, %c0_5, %c0_6] : memref<1x32x256xf32, #tpu.memory_space<vmem>>, vector<1x32x256xf32>
    %5 = vector.shape_cast %4 : vector<1x32x256xf32> to vector<32x256xf32>
    %c0_7 = arith.constant 0 : index
    %c0_8 = arith.constant 0 : index
    %6 = vector.load %arg5[%c0_7, %c0_8] : memref<32x384xf32, #tpu.memory_space<vmem>>, vector<32x256xf32>
    tpu.vector_store %arg5[%c0_7, %c0_8], %5 {strides = array<i32>} : memref<32x384xf32, #tpu.memory_space<vmem>>, vector<32x256xf32>,
    %c0_9 = arith.constant 0 : index
    %c0_10 = arith.constant 0 : index
    %7 = vector.load %arg5[%c0_9, %c0_10] : memref<32x384xf32, #tpu.memory_space<vmem>>, vector<32x384xf32>
    %c3_i32 = arith.constant 3 : i32
    %8 = tpu.dynamic_rotate %7 by %c3_i32 dim 1 : vector<32x384xf32>, i32 -> vector<32x384xf32>
    %c0_11 = arith.constant 0 : index
    %c0_12 = arith.constant 0 : index
    %9 = vector.load %arg6[%c0_11, %c0_12] : memref<160x384xf32, #tpu.memory_space<vmem>>, vector<32x384xf32>
    tpu.vector_store %arg6[%c0_11, %c0_12], %8 {strides = array<i32>} : memref<160x384xf32, #tpu.memory_space<vmem>>, vector<32x384xf32>,
    %c2_i32 = arith.constant 2 : i32
    %10 = tpu.dynamic_rotate %7 by %c2_i32 dim 1 : vector<32x384xf32>, i32 -> vector<32x384xf32>
    %c32 = arith.constant 32 : index
    %c0_13 = arith.constant 0 : index
    %11 = vector.load %arg6[%c32, %c0_13] : memref<160x384xf32, #tpu.memory_space<vmem>>, vector<32x384xf32>
    tpu.vector_store %arg6[%c32, %c0_13], %10 {strides = array<i32>} : memref<160x384xf32, #tpu.memory_space<vmem>>, vector<32x384xf32>,
    %c1_i32 = arith.constant 1 : i32
    %12 = tpu.dynamic_rotate %7 by %c1_i32 dim 1 : vector<32x384xf32>, i32 -> vector<32x384xf32>
    %c64 = arith.constant 64 : index
    %c0_14 = arith.constant 0 : index
    %13 = vector.load %arg6[%c64, %c0_14] : memref<160x384xf32, #tpu.memory_space<vmem>>, vector<32x384xf32>
    tpu.vector_store %arg6[%c64, %c0_14], %12 {strides = array<i32>} : memref<160x384xf32, #tpu.memory_space<vmem>>, vector<32x384xf32>,
    %c96 = arith.constant 96 : index
    %c0_15 = arith.constant 0 : index
    %14 = vector.load %arg6[%c96, %c0_15] : memref<160x384xf32, #tpu.memory_space<vmem>>, vector<32x384xf32>
    tpu.vector_store %arg6[%c96, %c0_15], %7 {strides = array<i32>} : memref<160x384xf32, #tpu.memory_space<vmem>>, vector<32x384xf32>,
    %c383_i32 = arith.constant 383 : i32
    %15 = tpu.dynamic_rotate %7 by %c383_i32 dim 1 : vector<32x384xf32>, i32 -> vector<32x384xf32>
    %c128 = arith.constant 128 : index
    %c0_16 = arith.constant 0 : index
    %16 = vector.load %arg6[%c128, %c0_16] : memref<160x384xf32, #tpu.memory_space<vmem>>, vector<32x384xf32>
    tpu.vector_store %arg6[%c128, %c0_16], %15 {strides = array<i32>} : memref<160x384xf32, #tpu.memory_space<vmem>>, vector<32x384xf32>,
    %c0_17 = arith.constant 0 : index
    %c0_18 = arith.constant 0 : index
    %17 = vector.load %arg6[%c0_17, %c0_18] : memref<160x384xf32, #tpu.memory_space<vmem>>, vector<160x384xf32>
    %cst_19 = arith.constant dense<0.000000e+00> : vector<16x384xf32>
    %18 = tpu.matmul %2, %17, %cst_19 {dimension_numbers = #tpu.dot_dimension_numbers<[1], [0], [0], [1], [0, 0, 1, 1], [], []>} : vector<16x160xf32>, vector<160x384xf32>, vector<16x384xf32> -> vector<16x384xf32>
    %19 = vector.broadcast %3 : vector<16x1xf32> to vector<16x384xf32>
    %20 = arith.addf %18, %19 : vector<16x384xf32>
    %21 = math.tanh %20 : vector<16x384xf32>
    %c0_20 = arith.constant 0 : index
    %c0_21 = arith.constant 0 : index
    %c0_22 = arith.constant 0 : index
    %22 = vector.load %arg4[%c0_20, %c0_21, %c0_22] : memref<1x16x384xf32, #tpu.memory_space<vmem>>, vector<1x16x384xf32>
    %23 = vector.shape_cast %22 : vector<1x16x384xf32> to vector<16x384xf32>
    %24 = vector.shape_cast %21 : vector<16x384xf32> to vector<1x16x384xf32>
    tpu.vector_store %arg4[%c0_20, %c0_21, %c0_22], %24 {strides = array<i32>} : memref<1x16x384xf32, #tpu.memory_space<vmem>>, vector<1x16x384xf32>,
    return
  }
  func.func @transform_0(%arg0: i32) -> (i32, i32, i32) {
    %c0_i32 = arith.constant 0 : i32
    %c0_i32_0 = arith.constant 0 : i32
    %c0_i32_1 = arith.constant 0 : i32
    return %arg0, %c0_i32, %c0_i32_0 : i32, i32, i32
  }
  func.func @transform_1(%arg0: i32) -> (i32, i32) {
    %c0_i32 = arith.constant 0 : i32
    %c0_i32_0 = arith.constant 0 : i32
    %c0_i32_1 = arith.constant 0 : i32
    return %c0_i32, %c0_i32_0 : i32, i32
  }
  func.func @transform_2(%arg0: i32) -> (i32, i32) {
    %c0_i32 = arith.constant 0 : i32
    %c0_i32_0 = arith.constant 0 : i32
    %c0_i32_1 = arith.constant 0 : i32
    return %c0_i32, %c0_i32_0 : i32, i32
  }
  func.func @transform_3(%arg0: i32) -> (i32, i32, i32) {
    %c0_i32 = arith.constant 0 : i32
    %c0_i32_0 = arith.constant 0 : i32
    %c0_i32_1 = arith.constant 0 : i32
    return %arg0, %c0_i32, %c0_i32_0 : i32, i32, i32
  }
}

</mosaic_0001>

<llo_original>
// kernel: tpu_custom_call.1
$region0: #{tpu_custom_call.1}
  #allocation0 [shape = 'u32[]', space=smem, size = 0x4, offset = 0x4, fixed_abs, tag = 'smem constant byte address 0x4 - core index']
  #allocation1 [shape = 'u32[144,128]{1,0:T(1,128)}', space=vmem, size = 0x12000, scoped, tag = 'internal scratch']
  #allocation2 [shape = 'f32[32,384]{1,0:T(8,128)}', space=vmem, size = 0xc000, scoped, tag = 'scratch operand']
  #allocation3 [shape = 'f32[160,384]{1,0:T(8,128)}', space=vmem, size = 0x3c000, scoped, tag = 'scratch operand']
  %s0 = inlined_call_operand.hbm [shape: f32[2,32,256], index: 0, kind: input, shape index: {}]
  %s1 = inlined_call_operand.hbm [shape: f32[16,160], index: 1, kind: input, shape index: {}]
  %s2 = inlined_call_operand.vmem [shape: f32[16,1], index: 2, kind: input, shape index: {}]
  %s3 = inlined_call_operand.hbm [shape: f32[2,16,384], index: 3, kind: output, shape index: {}]
  %s4 = sld [smem:[#allocation0]]
  $region53: #{tpu_custom_call.1} parent=0
    _
  %s6 = ssub.s32 1, %s4
  %s7 = scalar_select 0, %s6, %s4
  $region1: #{tpu_custom_call.1} parent=0
    #allocation4 [shape = 'u8[65536]{0}', space=vmem, size = 0x10000, scoped, tag = 'input window, operand 0']
    #allocation5 [shape = 's32[2]{0}', space=sflag, size = 0x8, scoped, tag = 'scoped memory for tpu_custom_call.1']
    #allocation6 [shape = 's32[2]{0}', space=sflag, size = 0x8, scoped, tag = 'scoped memory for tpu_custom_call.1']
    #allocation7 [shape = 'u8[16384]{0}', space=vmem, size = 0x4000, scoped, tag = 'input window, operand 1, single buffered']
    #allocation8 [shape = 's32[1]{0}', space=sflag, size = 0x4, scoped, tag = 'scoped memory for tpu_custom_call.1']
    #allocation9 [shape = 'u8[49152]{0}', space=vmem, size = 0xc000, scoped, tag = 'output window, operand 0']
    %8 = vsyncpa [#allocation5], 0
    %s9 = scalar_lea.sflag [#allocation5], 1
    %10 = vsyncpa %s9, 0
    %11 = vsyncpa [#allocation8], 0
    %12 = vsyncpa [#allocation6], 0
    %s13 = scalar_lea.sflag [#allocation6], 1
    %14 = vsyncpa %s13, 0
    loop: start=0, step=1, limit=4
    $region2: #{tpu_custom_call.1} parent=1 // loop_pre_header
      _
    $region3: #{tpu_custom_call.1} parent=1 // loop_header
      %s16 = sphi 0, %s20
      %p17 = scmp.ge.s32.totalorder %s16, 4
      %s26 = sphi 0, %s28
      %s29 = sphi 0, %s26
      %s30 = sphi 0, %s29
      %s46 = sphi 0, %s30
      %s50 = sphi 0, %s50
      %s52 = sphi 0, %s50
      %s53 = sphi 0, %s52
      %s67 = sphi 0, %s53
      %s71 = sphi 0, %s71
      %s73 = sphi 0, %s71
      %s74 = sphi 0, %s73
      %s88 = sphi 0, %s74
      %s94 = sphi 0, %s96
      %s97 = sphi 0, %s94
      %s98 = sphi 0, %s97
      %s114 = sphi 0, %s98
    $region4: #{tpu_custom_call.1} parent=1 // loop_header_branch
      %19 = sbr.rel (%p17) target = $region8
    $region5: #{tpu_custom_call.1} parent=1 // loop_body
      %s21 = ssub.s32 %s16, 1
      %s22 = ssub.s32 %s16, 2
      %s23 = sadd.s32 %s16, 1
      %s24 = ssub.s32 %s16, %s23
      %p25 = scmp.eq.s32.totalorder %s24, 0
      %s27 = sadd.s32 %s26, 1
      %s28 = scalar_select %p25, %s26, %s27
      %p31 = pneg %p25
      %p32 = scmp.eq.s32.totalorder %s16, 1
      %p33 = por %p31, %p32
      %p34 = scmp.ne.s32.totalorder %s26, %s29
      %p35 = scmp.eq.s32.totalorder %s16, 0
      %p36 = por %p34, %p35
      %p37 = scmp.ne.s32.totalorder %s26, %s29
      %p38 = scmp.eq.s32.totalorder %s21, 1
      %p39 = por %p37, %p38
      %p40 = scmp.ne.s32.totalorder %s29, %s30
      %p41 = scmp.eq.s32.totalorder %s21, 0
      %p42 = por %p40, %p41
      %p43 = scmp.ne.s32.totalorder %s29, %s30
      %p44 = scmp.eq.s32.totalorder %s22, 1
      %p45 = por %p43, %p44
      %p47 = scmp.ne.s32.totalorder %s30, %s46
      %p48 = scmp.eq.s32.totalorder %s22, 0
      %p49 = por %p47, %p48
      %s51 = sadd.s32 %s50, 1
      %p54 = scmp.eq.s32.totalorder %s16, 1
      %p55 = scmp.ne.s32.totalorder %s50, %s52
      %p56 = scmp.eq.s32.totalorder %s16, 0
      %p57 = por %p55, %p56
      %p58 = scmp.ne.s32.totalorder %s50, %s52
      %p59 = scmp.eq.s32.totalorder %s21, 1
      %p60 = por %p58, %p59
      %p61 = scmp.ne.s32.totalorder %s52, %s53
      %p62 = scmp.eq.s32.totalorder %s21, 0
      %p63 = por %p61, %p62
      %p64 = scmp.ne.s32.totalorder %s52, %s53
      %p65 = scmp.eq.s32.totalorder %s22, 1
      %p66 = por %p64, %p65
      %p68 = scmp.ne.s32.totalorder %s53, %s67
      %p69 = scmp.eq.s32.totalorder %s22, 0
      %p70 = por %p68, %p69
      %s72 = sadd.s32 %s71, 1
      %p75 = scmp.eq.s32.totalorder %s16, 1
      %p76 = scmp.ne.s32.totalorder %s71, %s73
      %p77 = scmp.eq.s32.totalorder %s16, 0
      %p78 = por %p76, %p77
      %p79 = scmp.ne.s32.totalorder %s71, %s73
      %p80 = scmp.eq.s32.totalorder %s21, 1
      %p81 = por %p79, %p80
      %p82 = scmp.ne.s32.totalorder %s73, %s74
      %p83 = scmp.eq.s32.totalorder %s21, 0
      %p84 = por %p82, %p83
      %p85 = scmp.ne.s32.totalorder %s73, %s74
      %p86 = scmp.eq.s32.totalorder %s22, 1
      %p87 = por %p85, %p86
      %p89 = scmp.ne.s32.totalorder %s74, %s88
      %p90 = scmp.eq.s32.totalorder %s22, 0
      %p91 = por %p89, %p90
      %s92 = ssub.s32 %s16, %s23
      %p93 = scmp.eq.s32.totalorder %s92, 0
      %s95 = sadd.s32 %s94, 1
      %s96 = scalar_select %p93, %s94, %s95
      %p99 = pneg %p93
      %p100 = scmp.eq.s32.totalorder %s16, 1
      %p101 = por %p99, %p100
      %p102 = scmp.ne.s32.totalorder %s94, %s97
      %p103 = scmp.eq.s32.totalorder %s16, 0
      %p104 = por %p102, %p103
      %p105 = scmp.ne.s32.totalorder %s94, %s97
      %p106 = scmp.eq.s32.totalorder %s21, 1
      %p107 = por %p105, %p106
      %p108 = scmp.ne.s32.totalorder %s97, %s98
      %p109 = scmp.eq.s32.totalorder %s21, 0
      %p110 = por %p108, %p109
      %p111 = scmp.ne.s32.totalorder %s97, %s98
      %p112 = scmp.eq.s32.totalorder %s22, 1
      %p113 = por %p111, %p112
      %p115 = scmp.ne.s32.totalorder %s98, %s114
      %p116 = scmp.eq.s32.totalorder %s22, 0
      %p117 = por %p115, %p116
      %p118 = scmp.le.s32.totalorder 1, %s16
      %p119 = scmp.lt.s32.totalorder %s16, 3
      %p120 = pnand %p118, %p119
      %p121 = pneg %p120
      // Predicated region
      $region9: #{tpu_custom_call.1} parent=5 // pred_check
        _
      $region10: #{tpu_custom_call.1} parent=5 // pred_check_branch
        %123 = sbr.rel (%p120) target = $region12
      $region11: #{tpu_custom_call.1} parent=5 // pred_region
        %s124 = ssub.s32 %s16, 1
        // Predicated region
        $region13: #{tpu_custom_call.1} parent=11 // pred_check
          %p125 = pneg %p63
        $region14: #{tpu_custom_call.1} parent=11 // pred_check_branch
          %127 = sbr.rel (%p125) target = $region16
        $region15: #{tpu_custom_call.1} parent=11 // pred_region
          %s129 = ssub.s32 512, 512
          %130 = vsyncadd [#allocation8], %s129
          %s131 = sshll.u32 [#allocation7], 4
          %s132 = int_to_ptr.vmem [resolvable:$true] %s131
          %137 = dma.hbm_to_vmem [thread:$0]  %s1, 512, %s132, [#allocation8], 256, 256, 16
        $region16: #{tpu_custom_call.1} parent=11 // pred_fallthru
          _
        // Predicated region
        $region17: #{tpu_custom_call.1} parent=11 // pred_check
          %p138 = pneg %p84
        $region18: #{tpu_custom_call.1} parent=11 // pred_check_branch
          %140 = sbr.rel (%p138) target = $region20
        $region19: #{tpu_custom_call.1} parent=11 // pred_region
          _
        $region20: #{tpu_custom_call.1} parent=11 // pred_fallthru
          _
      $region12: #{tpu_custom_call.1} parent=5 // pred_fallthru
        _
      %p141 = scmp.lt.s32.totalorder %s16, 2
      // Predicated region
      $region21: #{tpu_custom_call.1} parent=5 // pred_check
        %p142 = pneg %p141
      $region22: #{tpu_custom_call.1} parent=5 // pred_check_branch
        %144 = sbr.rel (%p142) target = $region24
      $region23: #{tpu_custom_call.1} parent=5 // pred_region
        // Predicated region
        $region25: #{tpu_custom_call.1} parent=23 // pred_check
          %p145 = pneg %p36
        $region26: #{tpu_custom_call.1} parent=23 // pred_check_branch
          %147 = sbr.rel (%p145) target = $region28
        $region27: #{tpu_custom_call.1} parent=23 // pred_region
          %s148 = sand.u32 %s26, 1
          %s149 = scalar_lea.sflag [#allocation5], %s148
          %s150 = sand.u32 %s26, 1
          %s151 = smul.addr %s150, 64
          %s152 = scalar_lea.vmem [#allocation4], %s151
          %s154 = ssub.s32 1024, 1024
          %155 = vsyncadd %s149, %s154
          %s156 = smul.addr %s16, 8
          %s157 = smul.addr %s156, 128
          %s158 = scalar_lea.hbm %s0, %s157
          %s159 = sshll.u32 %s152, 4
          %s160 = int_to_ptr.vmem [resolvable:$true] %s159
          %165 = dma.hbm_to_vmem [thread:$0]  %s158, 1024, %s160, %s149, 256, 256, 16
        $region28: #{tpu_custom_call.1} parent=23 // pred_fallthru
          _
      $region24: #{tpu_custom_call.1} parent=5 // pred_fallthru
        _
      %p166 = scmp.le.s32.totalorder 1, %s16
      %p167 = scmp.lt.s32.totalorder %s16, 3
      %p168 = pnand %p166, %p167
      %p169 = pneg %p168
      // Predicated region
      $region29: #{tpu_custom_call.1} parent=5 // pred_check
        _
      $region30: #{tpu_custom_call.1} parent=5 // pred_check_branch
        %171 = sbr.rel (%p168) target = $region32
      $region31: #{tpu_custom_call.1} parent=5 // pred_region
        %s172 = ssub.s32 %s16, 1
        %s173 = sand.u32 %s29, 1
        %s174 = scalar_lea.sflag [#allocation5], %s173
        %s175 = sand.u32 %s29, 1
        %s176 = smul.addr %s175, 64
        %s177 = scalar_lea.vmem [#allocation4], %s176
        // Predicated region
        $region33: #{tpu_custom_call.1} parent=31 // pred_check
          %p178 = pneg %p42
        $region34: #{tpu_custom_call.1} parent=31 // pred_check_branch
          %180 = sbr.rel (%p178) target = $region36
        $region35: #{tpu_custom_call.1} parent=31 // pred_region
          %181 = dma.done %s174, 1024
        $region36: #{tpu_custom_call.1} parent=31 // pred_fallthru
          _
        // Predicated region
        $region37: #{tpu_custom_call.1} parent=31 // pred_check
          %p182 = pneg %p63
        $region38: #{tpu_custom_call.1} parent=31 // pred_check_branch
          %184 = sbr.rel (%p182) target = $region40
        $region39: #{tpu_custom_call.1} parent=31 // pred_region
          %185 = dma.done [#allocation8], 512
        $region40: #{tpu_custom_call.1} parent=31 // pred_fallthru
          _
        %s186 = sand.u32 %s29, 1
        %s187 = scalar_lea.sflag [#allocation5], %s186
        %s188 = sand.u32 %s29, 1
        %s189 = smul.addr %s188, 64
        %s190 = scalar_lea.vmem [#allocation4], %s189
        %p191 = pneg %p42
        %p192 = pneg %p39
        %p193 = pneg %p63
        %p194 = pneg %p60
        %p195 = pneg %p84
        %p196 = pneg %p81
        %p197 = pneg %p110
        %p198 = pneg %p107
        %s199 = sand.u32 %s97, 1
        %s200 = scalar_lea.sflag [#allocation6], %s199
        %s201 = sand.u32 %s97, 1
        %s202 = smul.addr %s201, 48
        %s203 = scalar_lea.vmem [#allocation9], %s202
        %204 = vst [vmem:[#allocation2 + $0x10] sm:$0xff] 0.0
        %205 = vst [vmem:[#allocation2 + $0x28] sm:$0xff] 0.0
        %206 = vst [vmem:[#allocation2 + $0x40] sm:$0xff] 0.0
        %207 = vst [vmem:[#allocation2 + $0x58] sm:$0xff] 0.0
        %v208 = vld [vmem:[#allocation7] sm:$0xff]
        %v209 = vld [vmem:[#allocation7 + $0x8] sm:$0xff]
        %v210 = vld [vmem:[#allocation7 + $0x10] sm:$0xff]
        %v211 = vld [vmem:[#allocation7 + $0x18] sm:$0xff]
        %v212 = vld [vmem:[%s2] sm:$0xff]
        %v213 = vld [vmem:[%s2 + $0x8] sm:$0xff]
        %v214 = vld [vmem:[%s177] sm:$0xff]
        %v215 = vld [vmem:[%s177 + $0x8] sm:$0xff]
        %v216 = vld [vmem:[%s177 + $0x10] sm:$0xff]
        %v217 = vld [vmem:[%s177 + $0x18] sm:$0xff]
        %v218 = vld [vmem:[%s177 + $0x20] sm:$0xff]
        %v219 = vld [vmem:[%s177 + $0x28] sm:$0xff]
        %v220 = vld [vmem:[%s177 + $0x30] sm:$0xff]
        %v221 = vld [vmem:[%s177 + $0x38] sm:$0xff]
        %222 = vst [vmem:[#allocation2] sm:$0xff] %v214
        %223 = vst [vmem:[#allocation2 + $0x8] sm:$0xff] %v215
        %224 = vst [vmem:[#allocation2 + $0x18] sm:$0xff] %v216
        %225 = vst [vmem:[#allocation2 + $0x20] sm:$0xff] %v217
        %226 = vst [vmem:[#allocation2 + $0x30] sm:$0xff] %v218
        %227 = vst [vmem:[#allocation2 + $0x38] sm:$0xff] %v219
        %228 = vst [vmem:[#allocation2 + $0x48] sm:$0xff] %v220
        %229 = vst [vmem:[#allocation2 + $0x50] sm:$0xff] %v221
        %v230 = vld [vmem:[#allocation2] sm:$0xff]
        %v231 = vld [vmem:[#allocation2 + $0x8] sm:$0xff]
        %v232 = vld [vmem:[#allocation2 + $0x10] sm:$0xff]
        %v233 = vld [vmem:[#allocation2 + $0x18] sm:$0xff]
        %v234 = vld [vmem:[#allocation2 + $0x20] sm:$0xff]
        %v235 = vld [vmem:[#allocation2 + $0x28] sm:$0xff]
        %v236 = vld [vmem:[#allocation2 + $0x30] sm:$0xff]
        %v237 = vld [vmem:[#allocation2 + $0x38] sm:$0xff]
        %v238 = vld [vmem:[#allocation2 + $0x40] sm:$0xff]
        %v239 = vld [vmem:[#allocation2 + $0x48] sm:$0xff]
        %v240 = vld [vmem:[#allocation2 + $0x50] sm:$0xff]
        %v241 = vld [vmem:[#allocation2 + $0x58] sm:$0xff]
        %242 = vrot.lane.b32.xlu0 %v230, 3
        %v243 = vpop.permute.xlu0 %242
        %244 = vrot.lane.b32.xlu0 %v233, 3
        %v245 = vpop.permute.xlu0 %244
        %246 = vrot.lane.b32.xlu0 %v236, 3
        %v247 = vpop.permute.xlu0 %246
        %248 = vrot.lane.b32.xlu0 %v239, 3
        %v249 = vpop.permute.xlu0 %248
        %250 = vrot.lane.b32.xlu0 %v231, 3
        %v251 = vpop.permute.xlu0 %250
        %252 = vrot.lane.b32.xlu0 %v234, 3
        %v253 = vpop.permute.xlu0 %252
        %254 = vrot.lane.b32.xlu0 %v237, 3
        %v255 = vpop.permute.xlu0 %254
        %256 = vrot.lane.b32.xlu0 %v240, 3
        %v257 = vpop.permute.xlu0 %256
        %258 = vrot.lane.b32.xlu0 %v232, 3
        %v259 = vpop.permute.xlu0 %258
        %260 = vrot.lane.b32.xlu0 %v235, 3
        %v261 = vpop.permute.xlu0 %260
        %262 = vrot.lane.b32.xlu0 %v238, 3
        %v263 = vpop.permute.xlu0 %262
        %264 = vrot.lane.b32.xlu0 %v241, 3
        %v265 = vpop.permute.xlu0 %264
        %v266 = vlaneseq
        %v267 = vand.u32 %v266, 127
        %vm268 = vcmp.lt.s32.totalorder %v267, 3
        %v269 = vsel %vm268, %v251, %v259
        %v270 = vsel %vm268, %v253, %v261
        %v271 = vsel %vm268, %v255, %v263
        %v272 = vsel %vm268, %v257, %v265
        %v273 = vsel %vm268, %v243, %v251
        %v274 = vsel %vm268, %v245, %v253
        %v275 = vsel %vm268, %v247, %v255
        %v276 = vsel %vm268, %v249, %v257
        %v277 = vsel %vm268, %v259, %v243
        %v278 = vsel %vm268, %v261, %v245
        %v279 = vsel %vm268, %v263, %v247
        %v280 = vsel %vm268, %v265, %v249
        %281 = vst [vmem:[#allocation3] sm:$0xff] %v277
        %282 = vst [vmem:[#allocation3 + $0x8] sm:$0xff] %v273
        %283 = vst [vmem:[#allocation3 + $0x10] sm:$0xff] %v269
        %284 = vst [vmem:[#allocation3 + $0x18] sm:$0xff] %v278
        %285 = vst [vmem:[#allocation3 + $0x20] sm:$0xff] %v274
        %286 = vst [vmem:[#allocation3 + $0x28] sm:$0xff] %v270
        %287 = vst [vmem:[#allocation3 + $0x30] sm:$0xff] %v279
        %288 = vst [vmem:[#allocation3 + $0x38] sm:$0xff] %v275
        %289 = vst [vmem:[#allocation3 + $0x40] sm:$0xff] %v271
        %290 = vst [vmem:[#allocation3 + $0x48] sm:$0xff] %v280
        %291 = vst [vmem:[#allocation3 + $0x50] sm:$0xff] %v276
        %292 = vst [vmem:[#allocation3 + $0x58] sm:$0xff] %v272
        %293 = vrot.lane.b32.xlu0 %v230, 2
        %v294 = vpop.permute.xlu0 %293
        %295 = vrot.lane.b32.xlu0 %v233, 2
        %v296 = vpop.permute.xlu0 %295
        %297 = vrot.lane.b32.xlu0 %v236, 2
        %v298 = vpop.permute.xlu0 %297
        %299 = vrot.lane.b32.xlu0 %v239, 2
        %v300 = vpop.permute.xlu0 %299
        %301 = vrot.lane.b32.xlu0 %v231, 2
        %v302 = vpop.permute.xlu0 %301
        %303 = vrot.lane.b32.xlu0 %v234, 2
        %v304 = vpop.permute.xlu0 %303
        %305 = vrot.lane.b32.xlu0 %v237, 2
        %v306 = vpop.permute.xlu0 %305
        %307 = vrot.lane.b32.xlu0 %v240, 2
        %v308 = vpop.permute.xlu0 %307
        %309 = vrot.lane.b32.xlu0 %v232, 2
        %v310 = vpop.permute.xlu0 %309
        %311 = vrot.lane.b32.xlu0 %v235, 2
        %v312 = vpop.permute.xlu0 %311
        %313 = vrot.lane.b32.xlu0 %v238, 2
        %v314 = vpop.permute.xlu0 %313
        %315 = vrot.lane.b32.xlu0 %v241, 2
        %v316 = vpop.permute.xlu0 %315
        %vm317 = vcmp.lt.s32.totalorder %v267, 2
        %v318 = vsel %vm317, %v302, %v310
        %v319 = vsel %vm317, %v304, %v312
        %v320 = vsel %vm317, %v306, %v314
        %v321 = vsel %vm317, %v308, %v316
        %v322 = vsel %vm317, %v294, %v302
        %v323 = vsel %vm317, %v296, %v304
        %v324 = vsel %vm317, %v298, %v306
        %v325 = vsel %vm317, %v300, %v308
        %v326 = vsel %vm317, %v310, %v294
        %v327 = vsel %vm317, %v312, %v296
        %v328 = vsel %vm317, %v314, %v298
        %v329 = vsel %vm317, %v316, %v300
        %330 = vst [vmem:[#allocation3 + $0x60] sm:$0xff] %v326
        %331 = vst [vmem:[#allocation3 + $0x68] sm:$0xff] %v322
        %332 = vst [vmem:[#allocation3 + $0x70] sm:$0xff] %v318
        %333 = vst [vmem:[#allocation3 + $0x78] sm:$0xff] %v327
        %334 = vst [vmem:[#allocation3 + $0x80] sm:$0xff] %v323
        %335 = vst [vmem:[#allocation3 + $0x88] sm:$0xff] %v319
        %336 = vst [vmem:[#allocation3 + $0x90] sm:$0xff] %v328
        %337 = vst [vmem:[#allocation3 + $0x98] sm:$0xff] %v324
        %338 = vst [vmem:[#allocation3 + $0xa0] sm:$0xff] %v320
        %339 = vst [vmem:[#allocation3 + $0xa8] sm:$0xff] %v329
        %340 = vst [vmem:[#allocation3 + $0xb0] sm:$0xff] %v325
        %341 = vst [vmem:[#allocation3 + $0xb8] sm:$0xff] %v321
        %342 = vrot.lane.b32.xlu0 %v230, 1
        %v343 = vpop.permute.xlu0 %342
        %344 = vrot.lane.b32.xlu0 %v233, 1
        %v345 = vpop.permute.xlu0 %344
        %346 = vrot.lane.b32.xlu0 %v236, 1
        %v347 = vpop.permute.xlu0 %346
        %348 = vrot.lane.b32.xlu0 %v239, 1
        %v349 = vpop.permute.xlu0 %348
        %350 = vrot.lane.b32.xlu0 %v231, 1
        %v351 = vpop.permute.xlu0 %350
        %352 = vrot.lane.b32.xlu0 %v234, 1
        %v353 = vpop.permute.xlu0 %352
        %354 = vrot.lane.b32.xlu0 %v237, 1
        %v355 = vpop.permute.xlu0 %354
        %356 = vrot.lane.b32.xlu0 %v240, 1
        %v357 = vpop.permute.xlu0 %356
        %358 = vrot.lane.b32.xlu0 %v232, 1
        %v359 = vpop.permute.xlu0 %358
        %360 = vrot.lane.b32.xlu0 %v235, 1
        %v361 = vpop.permute.xlu0 %360
        %362 = vrot.lane.b32.xlu0 %v238, 1
        %v363 = vpop.permute.xlu0 %362
        %364 = vrot.lane.b32.xlu0 %v241, 1
        %v365 = vpop.permute.xlu0 %364
        %vm366 = vcmp.lt.s32.totalorder %v267, 1
        %v367 = vsel %vm366, %v351, %v359
        %v368 = vsel %vm366, %v353, %v361
        %v369 = vsel %vm366, %v355, %v363
        %v370 = vsel %vm366, %v357, %v365
        %v371 = vsel %vm366, %v343, %v351
        %v372 = vsel %vm366, %v345, %v353
        %v373 = vsel %vm366, %v347, %v355
        %v374 = vsel %vm366, %v349, %v357
        %v375 = vsel %vm366, %v359, %v343
        %v376 = vsel %vm366, %v361, %v345
        %v377 = vsel %vm366, %v363, %v347
        %v378 = vsel %vm366, %v365, %v349
        %379 = vst [vmem:[#allocation3 + $0xc0] sm:$0xff] %v375
        %380 = vst [vmem:[#allocation3 + $0xc8] sm:$0xff] %v371
        %381 = vst [vmem:[#allocation3 + $0xd0] sm:$0xff] %v367
        %382 = vst [vmem:[#allocation3 + $0xd8] sm:$0xff] %v376
        %383 = vst [vmem:[#allocation3 + $0xe0] sm:$0xff] %v372
        %384 = vst [vmem:[#allocation3 + $0xe8] sm:$0xff] %v368
        %385 = vst [vmem:[#allocation3 + $0xf0] sm:$0xff] %v377
        %386 = vst [vmem:[#allocation3 + $0xf8] sm:$0xff] %v373
        %387 = vst [vmem:[#allocation3 + $0x100] sm:$0xff] %v369
        %388 = vst [vmem:[#allocation3 + $0x108] sm:$0xff] %v378
        %389 = vst [vmem:[#allocation3 + $0x110] sm:$0xff] %v374
        %390 = vst [vmem:[#allocation3 + $0x118] sm:$0xff] %v370
        %391 = vst [vmem:[#allocation3 + $0x120] sm:$0xff] %v230
        %392 = vst [vmem:[#allocation3 + $0x128] sm:$0xff] %v231
        %393 = vst [vmem:[#allocation3 + $0x130] sm:$0xff] %v232
        %394 = vst [vmem:[#allocation3 + $0x138] sm:$0xff] %v233
        %395 = vst [vmem:[#allocation3 + $0x140] sm:$0xff] %v234
        %396 = vst [vmem:[#allocation3 + $0x148] sm:$0xff] %v235
        %397 = vst [vmem:[#allocation3 + $0x150] sm:$0xff] %v236
        %398 = vst [vmem:[#allocation3 + $0x158] sm:$0xff] %v237
        %399 = vst [vmem:[#allocation3 + $0x160] sm:$0xff] %v238
        %400 = vst [vmem:[#allocation3 + $0x168] sm:$0xff] %v239
        %401 = vst [vmem:[#allocation3 + $0x170] sm:$0xff] %v240
        %402 = vst [vmem:[#allocation3 + $0x178] sm:$0xff] %v241
        %403 = vrot.lane.b32.xlu0 %v230, 127
        %v404 = vpop.permute.xlu0 %403
        %405 = vrot.lane.b32.xlu0 %v233, 127
        %v406 = vpop.permute.xlu0 %405
        %407 = vrot.lane.b32.xlu0 %v236, 127
        %v408 = vpop.permute.xlu0 %407
        %409 = vrot.lane.b32.xlu0 %v239, 127
        %v410 = vpop.permute.xlu0 %409
        %411 = vrot.lane.b32.xlu0 %v231, 127
        %v412 = vpop.permute.xlu0 %411
        %413 = vrot.lane.b32.xlu0 %v234, 127
        %v414 = vpop.permute.xlu0 %413
        %415 = vrot.lane.b32.xlu0 %v237, 127
        %v416 = vpop.permute.xlu0 %415
        %417 = vrot.lane.b32.xlu0 %v240, 127
        %v418 = vpop.permute.xlu0 %417
        %419 = vrot.lane.b32.xlu0 %v232, 127
        %v420 = vpop.permute.xlu0 %419
        %421 = vrot.lane.b32.xlu0 %v235, 127
        %v422 = vpop.permute.xlu0 %421
        %423 = vrot.lane.b32.xlu0 %v238, 127
        %v424 = vpop.permute.xlu0 %423
        %425 = vrot.lane.b32.xlu0 %v241, 127
        %v426 = vpop.permute.xlu0 %425
        %vm427 = vcmp.lt.s32.totalorder %v267, 127
        %v428 = vsel %vm427, %v412, %v420
        %v429 = vsel %vm427, %v414, %v422
        %v430 = vsel %vm427, %v416, %v424
        %v431 = vsel %vm427, %v418, %v426
        %v432 = vsel %vm427, %v404, %v412
        %v433 = vsel %vm427, %v406, %v414
        %v434 = vsel %vm427, %v408, %v416
        %v435 = vsel %vm427, %v410, %v418
        %v436 = vsel %vm427, %v420, %v404
        %v437 = vsel %vm427, %v422, %v406
        %v438 = vsel %vm427, %v424, %v408
        %v439 = vsel %vm427, %v426, %v410
        %440 = vst [vmem:[#allocation3 + $0x180] sm:$0xff] %v432
        %441 = vst [vmem:[#allocation3 + $0x188] sm:$0xff] %v428
        %442 = vst [vmem:[#allocation3 + $0x190] sm:$0xff] %v436
        %443 = vst [vmem:[#allocation3 + $0x198] sm:$0xff] %v433
        %444 = vst [vmem:[#allocation3 + $0x1a0] sm:$0xff] %v429
        %445 = vst [vmem:[#allocation3 + $0x1a8] sm:$0xff] %v437
        %446 = vst [vmem:[#allocation3 + $0x1b0] sm:$0xff] %v434
        %447 = vst [vmem:[#allocation3 + $0x1b8] sm:$0xff] %v430
        %448 = vst [vmem:[#allocation3 + $0x1c0] sm:$0xff] %v438
        %449 = vst [vmem:[#allocation3 + $0x1c8] sm:$0xff] %v435
        %450 = vst [vmem:[#allocation3 + $0x1d0] sm:$0xff] %v431
        %451 = vst [vmem:[#allocation3 + $0x1d8] sm:$0xff] %v439
        %v452 = vld [vmem:[#allocation3] sm:$0xff]
        %v453 = vld [vmem:[#allocation3 + $0x8] sm:$0xff]
        %v454 = vld [vmem:[#allocation3 + $0x10] sm:$0xff]
        %v455 = vld [vmem:[#allocation3 + $0x18] sm:$0xff]
        %v456 = vld [vmem:[#allocation3 + $0x20] sm:$0xff]
        %v457 = vld [vmem:[#allocation3 + $0x28] sm:$0xff]
        %v458 = vld [vmem:[#allocation3 + $0x30] sm:$0xff]
        %v459 = vld [vmem:[#allocation3 + $0x38] sm:$0xff]
        %v460 = vld [vmem:[#allocation3 + $0x40] sm:$0xff]
        %v461 = vld [vmem:[#allocation3 + $0x48] sm:$0xff]
        %v462 = vld [vmem:[#allocation3 + $0x50] sm:$0xff]
        %v463 = vld [vmem:[#allocation3 + $0x58] sm:$0xff]
        %v464 = vld [vmem:[#allocation3 + $0x60] sm:$0xff]
        %v465 = vld [vmem:[#allocation3 + $0x68] sm:$0xff]
        %v466 = vld [vmem:[#allocation3 + $0x70] sm:$0xff]
        %v467 = vld [vmem:[#allocation3 + $0x78] sm:$0xff]
        %v468 = vld [vmem:[#allocation3 + $0x80] sm:$0xff]
        %v469 = vld [vmem:[#allocation3 + $0x88] sm:$0xff]
        %v470 = vld [vmem:[#allocation3 + $0x90] sm:$0xff]
        %v471 = vld [vmem:[#allocation3 + $0x98] sm:$0xff]
        %v472 = vld [vmem:[#allocation3 + $0xa0] sm:$0xff]
        %v473 = vld [vmem:[#allocation3 + $0xa8] sm:$0xff]
        %v474 = vld [vmem:[#allocation3 + $0xb0] sm:$0xff]
        %v475 = vld [vmem:[#allocation3 + $0xb8] sm:$0xff]
        %v476 = vld [vmem:[#allocation3 + $0xc0] sm:$0xff]
        %v477 = vld [vmem:[#allocation3 + $0xc8] sm:$0xff]
        %v478 = vld [vmem:[#allocation3 + $0xd0] sm:$0xff]
        %v479 = vld [vmem:[#allocation3 + $0xd8] sm:$0xff]
        %v480 = vld [vmem:[#allocation3 + $0xe0] sm:$0xff]
        %v481 = vld [vmem:[#allocation3 + $0xe8] sm:$0xff]
        %v482 = vld [vmem:[#allocation3 + $0xf0] sm:$0xff]
        %v483 = vld [vmem:[#allocation3 + $0xf8] sm:$0xff]
        %v484 = vld [vmem:[#allocation3 + $0x100] sm:$0xff]
        %v485 = vld [vmem:[#allocation3 + $0x108] sm:$0xff]
        %v486 = vld [vmem:[#allocation3 + $0x110] sm:$0xff]
        %v487 = vld [vmem:[#allocation3 + $0x118] sm:$0xff]
        %v488 = vld [vmem:[#allocation3 + $0x120] sm:$0xff]
        %v489 = vld [vmem:[#allocation3 + $0x128] sm:$0xff]
        %v490 = vld [vmem:[#allocation3 + $0x130] sm:$0xff]
        %v491 = vld [vmem:[#allocation3 + $0x138] sm:$0xff]
        %v492 = vld [vmem:[#allocation3 + $0x140] sm:$0xff]
        %v493 = vld [vmem:[#allocation3 + $0x148] sm:$0xff]
        %v494 = vld [vmem:[#allocation3 + $0x150] sm:$0xff]
        %v495 = vld [vmem:[#allocation3 + $0x158] sm:$0xff]
        %v496 = vld [vmem:[#allocation3 + $0x160] sm:$0xff]
        %v497 = vld [vmem:[#allocation3 + $0x168] sm:$0xff]
        %v498 = vld [vmem:[#allocation3 + $0x170] sm:$0xff]
        %v499 = vld [vmem:[#allocation3 + $0x178] sm:$0xff]
        %v500 = vld [vmem:[#allocation3 + $0x180] sm:$0xff]
        %v501 = vld [vmem:[#allocation3 + $0x188] sm:$0xff]
        %v502 = vld [vmem:[#allocation3 + $0x190] sm:$0xff]
        %v503 = vld [vmem:[#allocation3 + $0x198] sm:$0xff]
        %v504 = vld [vmem:[#allocation3 + $0x1a0] sm:$0xff]
        %v505 = vld [vmem:[#allocation3 + $0x1a8] sm:$0xff]
        %v506 = vld [vmem:[#allocation3 + $0x1b0] sm:$0xff]
        %v507 = vld [vmem:[#allocation3 + $0x1b8] sm:$0xff]
        %v508 = vld [vmem:[#allocation3 + $0x1c0] sm:$0xff]
        %v509 = vld [vmem:[#allocation3 + $0x1c8] sm:$0xff]
        %v510 = vld [vmem:[#allocation3 + $0x1d0] sm:$0xff]
        %v511 = vld [vmem:[#allocation3 + $0x1d8] sm:$0xff]
        %513 = vset.pattern.permute.xlu0 0
        %514 = vperm.xlu0 %513, %v212
        %v515 = vpop.permute.xlu0 %514
        %518 = vset.pattern.permute.xlu0 0
        %519 = vperm.xlu0 %518, %v213
        %v520 = vpop.permute.xlu0 %519
        %vm522 = vcmask 261120
        %v524 = vsel %vm522, %v209, 0
        %v527 = vsel %vm522, %v211, 0
        %529 = vmatprep.subr.mxu0 %v453
        %530 = vmatpush1.msra.mxu0 %v452
        %531 = vmatprep.subr.mxu0 %v456
        %532 = vmatpush1.msra.mxu0 %v455
        %533 = vmatprep.subr.mxu0 %v459
        %534 = vmatpush1.msra.mxu0 %v458
        %535 = vmatprep.subr.mxu0 %v462
        %536 = vmatpush1.msra.mxu0 %v461
        %537 = vmatprep.subr.mxu0 %v465
        %538 = vmatpush1.msra.mxu0 %v464
        %539 = vmatprep.subr.mxu0 %v468
        %540 = vmatpush1.msra.mxu0 %v467
        %541 = vmatprep.subr.mxu0 %v471
        %542 = vmatpush1.msra.mxu0 %v470
        %543 = vmatprep.subr.mxu0 %v474
        %544 = vmatpush1.msra.mxu0 %v473
        %545 = vmatprep.subr.mxu0 %v477
        %546 = vmatpush1.msra.mxu0 %v476
        %547 = vmatprep.subr.mxu0 %v480
        %548 = vmatpush1.msra.mxu0 %v479
        %549 = vmatprep.subr.mxu0 %v483
        %550 = vmatpush1.msra.mxu0 %v482
        %551 = vmatprep.subr.mxu0 %v486
        %552 = vmatpush1.msra.mxu0 %v485
        %553 = vmatprep.subr.mxu0 %v489
        %554 = vmatpush1.msra.mxu0 %v488
        %555 = vmatprep.subr.mxu0 %v492
        %556 = vmatpush1.msra.mxu0 %v491
        %557 = vmatprep.subr.mxu0 %v495
        %558 = vmatpush1.msra.mxu0 %v494
        %559 = vmatprep.subr.mxu0 %v498
        %560 = vmatpush1.msra.mxu0 %v497
        %561 = vmatprep.subr.mxu0 %v501
        %562 = vmatpush1.msra.mxu0 %v500
        %563 = vmatprep.subr.mxu0 %v504
        %564 = vmatpush1.msra.mxu0 %v503
        %565 = vmatprep.subr.mxu0 %v507
        %566 = vmatpush1.msra.mxu0 %v506
        %567 = vmatprep.subr.mxu0 %v510
        %568 = vmatpush1.msra.mxu0 %v509
        %569 = vmatprep.subr.mxu0 0.0
        %570 = vmatpush1.msra.mxu0 0.0
        %571 = vmatprep.subr.mxu0 0.0
        %572 = vmatpush1.msra.mxu0 0.0
        %573 = vmatprep.subr.mxu0 0.0
        %574 = vmatpush1.msra.mxu0 0.0
        %575 = vmatprep.subr.mxu0 0.0
        %576 = vmatpush1.msra.mxu0 0.0
        %577 = vmatprep.subr.mxu0 0.0
        %578 = vmatpush1.msra.mxu0 0.0
        %579 = vmatprep.subr.mxu0 0.0
        %580 = vmatpush1.msra.mxu0 0.0
        %581 = vmatprep.subr.mxu0 0.0
        %582 = vmatpush1.msra.mxu0 0.0
        %583 = vmatprep.subr.mxu0 0.0
        %584 = vmatpush1.msra.mxu0 0.0
        %585 = vmatprep.subr.mxu0 0.0
        %586 = vmatpush1.msra.mxu0 0.0
        %587 = vmatprep.subr.mxu0 0.0
        %588 = vmatpush1.msra.mxu0 0.0
        %589 = vmatprep.subr.mxu0 0.0
        %590 = vmatpush1.msra.mxu0 0.0
        %591 = vmatprep.subr.mxu0 0.0
        %592 = vmatpush1.msra.mxu0 0.0
        %593 = vmatprep.mubr.f32.mxu0 %v524
        %594 = vmatmul.mubr.f32.gmra.mrb[0].mxu0 %v208
        %v595 = vpop.f32.mrb[0].mxu0
        %v596 = vadd.f32 %v515, %v595
        %v597 = vpop.f32.mrb[0].mxu0
        %v598 = vadd.f32 %v515, %v597
        %599 = vmatprep.mubr.f32.mxu0 %v527
        %600 = vmatmul.mubr.f32.gmra.mrb[0].mxu0 %v210
        %v601 = vpop.f32.mrb[0].mxu0
        %v602 = vadd.f32 %v520, %v601
        %v603 = vpop.f32.mrb[0].mxu0
        %v604 = vadd.f32 %v520, %v603
        %605 = vdwg.mxu0
        %606 = vmatprep.subr.mxu0 0.0
        %607 = vmatpush1.msra.mxu0 %v454
        %608 = vmatprep.subr.mxu0 0.0
        %609 = vmatpush1.msra.mxu0 %v457
        %610 = vmatprep.subr.mxu0 0.0
        %611 = vmatpush1.msra.mxu0 %v460
        %612 = vmatprep.subr.mxu0 0.0
        %613 = vmatpush1.msra.mxu0 %v463
        %614 = vmatprep.subr.mxu0 0.0
        %615 = vmatpush1.msra.mxu0 %v466
        %616 = vmatprep.subr.mxu0 0.0
        %617 = vmatpush1.msra.mxu0 %v469
        %618 = vmatprep.subr.mxu0 0.0
        %619 = vmatpush1.msra.mxu0 %v472
        %620 = vmatprep.subr.mxu0 0.0
        %621 = vmatpush1.msra.mxu0 %v475
        %622 = vmatprep.subr.mxu0 0.0
        %623 = vmatpush1.msra.mxu0 %v478
        %624 = vmatprep.subr.mxu0 0.0
        %625 = vmatpush1.msra.mxu0 %v481
        %626 = vmatprep.subr.mxu0 0.0
        %627 = vmatpush1.msra.mxu0 %v484
        %628 = vmatprep.subr.mxu0 0.0
        %629 = vmatpush1.msra.mxu0 %v487
        %630 = vmatprep.subr.mxu0 0.0
        %631 = vmatpush1.msra.mxu0 %v490
        %632 = vmatprep.subr.mxu0 0.0
        %633 = vmatpush1.msra.mxu0 %v493
        %634 = vmatprep.subr.mxu0 0.0
        %635 = vmatpush1.msra.mxu0 %v496
        %636 = vmatprep.subr.mxu0 0.0
        %637 = vmatpush1.msra.mxu0 %v499
        %638 = vmatprep.subr.mxu0 0.0
        %639 = vmatpush1.msra.mxu0 %v502
        %640 = vmatprep.subr.mxu0 0.0
        %641 = vmatpush1.msra.mxu0 %v505
        %642 = vmatprep.subr.mxu0 0.0
        %643 = vmatpush1.msra.mxu0 %v508
        %644 = vmatprep.subr.mxu0 0.0
        %645 = vmatpush1.msra.mxu0 %v511
        %646 = vmatprep.subr.mxu0 0.0
        %647 = vmatpush1.msra.mxu0 0.0
        %648 = vmatprep.subr.mxu0 0.0
        %649 = vmatpush1.msra.mxu0 0.0
        %650 = vmatprep.subr.mxu0 0.0
        %651 = vmatpush1.msra.mxu0 0.0
        %652 = vmatprep.subr.mxu0 0.0
        %653 = vmatpush1.msra.mxu0 0.0
        %654 = vmatprep.subr.mxu0 0.0
        %655 = vmatpush1.msra.mxu0 0.0
        %656 = vmatprep.subr.mxu0 0.0
        %657 = vmatpush1.msra.mxu0 0.0
        %658 = vmatprep.subr.mxu0 0.0
        %659 = vmatpush1.msra.mxu0 0.0
        %660 = vmatprep.subr.mxu0 0.0
        %661 = vmatpush1.msra.mxu0 0.0
        %662 = vmatprep.subr.mxu0 0.0
        %663 = vmatpush1.msra.mxu0 0.0
        %664 = vmatprep.subr.mxu0 0.0
        %665 = vmatpush1.msra.mxu0 0.0
        %666 = vmatprep.subr.mxu0 0.0
        %667 = vmatpush1.msra.mxu0 0.0
        %668 = vmatprep.subr.mxu0 0.0
        %669 = vmatpush1.msra.mxu0 0.0
        %670 = vmatprep.mubr.f32.mxu0 %v524
        %671 = vmatmul.mubr.f32.gmra.mrb[0].mxu0 %v208
        %v672 = vpop.f32.mrb[0].mxu0
        %v673 = vadd.f32 %v515, %v672
        %v674 = vpop.f32.mrb[0].mxu0
        %675 = vmatprep.mubr.f32.mxu0 %v527
        %676 = vmatmul.mubr.f32.gmra.mrb[0].mxu0 %v210
        %v677 = vpop.f32.mrb[0].mxu0
        %v678 = vadd.f32 %v520, %v677
        %v679 = vpop.f32.mrb[0].mxu0
        %680 = vdwg.mxu0
        %v681 = vtanh.pop %v596
        %v682 = vtanh.pop %v598
        %v683 = vtanh.pop %v673
        %v684 = vtanh.pop %v602
        %v685 = vtanh.pop %v604
        %v686 = vtanh.pop %v678
        %687 = vst [vmem:[%s203] sm:$0xff] %v681
        %688 = vst [vmem:[%s203 + $0x8] sm:$0xff] %v682
        %689 = vst [vmem:[%s203 + $0x10] sm:$0xff] %v683
        %690 = vst [vmem:[%s203 + $0x18] sm:$0xff] %v684
        %691 = vst [vmem:[%s203 + $0x20] sm:$0xff] %v685
        %692 = vst [vmem:[%s203 + $0x28] sm:$0xff] %v686
        %s693 = sand.u32 %s97, 1
        %s694 = scalar_lea.sflag [#allocation6], %s693
        %s695 = sand.u32 %s97, 1
        %s696 = smul.addr %s695, 48
        %s697 = scalar_lea.vmem [#allocation9], %s696
        // Predicated region
        $region41: #{tpu_custom_call.1} parent=31 // pred_check
          %p698 = pneg %p107
        $region42: #{tpu_custom_call.1} parent=31 // pred_check_branch
          %700 = sbr.rel (%p698) target = $region44
        $region43: #{tpu_custom_call.1} parent=31 // pred_region
          %s702 = ssub.s32 768, 768
          %703 = vsyncadd %s694, %s702
          %s704 = smul.addr %s21, 6
          %s705 = smul.addr %s704, 128
          %s706 = scalar_lea.hbm %s3, %s705
          %s707 = sshll.u32 %s697, 4
          %s708 = int_to_ptr.vmem [resolvable:$true] %s707
          %713 = dma.vmem_to_hbm [thread:$0]  %s708, 768, %s706, %s694, 384, 384, 24
        $region44: #{tpu_custom_call.1} parent=31 // pred_fallthru
          _
      $region32: #{tpu_custom_call.1} parent=5 // pred_fallthru
        _
      %p714 = scmp.le.s32.totalorder 2, %s16
      // Predicated region
      $region45: #{tpu_custom_call.1} parent=5 // pred_check
        %p715 = pneg %p714
      $region46: #{tpu_custom_call.1} parent=5 // pred_check_branch
        %717 = sbr.rel (%p715) target = $region48
      $region47: #{tpu_custom_call.1} parent=5 // pred_region
        %s718 = ssub.s32 %s16, 2
        // Predicated region
        $region49: #{tpu_custom_call.1} parent=47 // pred_check
          %p719 = pneg %p113
        $region50: #{tpu_custom_call.1} parent=47 // pred_check_branch
          %721 = sbr.rel (%p719) target = $region52
        $region51: #{tpu_custom_call.1} parent=47 // pred_region
          %s722 = sand.u32 %s98, 1
          %s723 = scalar_lea.sflag [#allocation6], %s722
          %s724 = sand.u32 %s98, 1
          %s725 = smul.addr %s724, 48
          %s726 = scalar_lea.vmem [#allocation9], %s725
          %727 = dma.done %s723, 768
        $region52: #{tpu_custom_call.1} parent=47 // pred_fallthru
          _
      $region48: #{tpu_custom_call.1} parent=5 // pred_fallthru
        _
    $region6: #{tpu_custom_call.1} parent=1 // loop_footer
      %s20 = sadd.s32 1, %s16
    $region7: #{tpu_custom_call.1} parent=1 // loop_footer_branch
      %15 = sbr.rel target = $region3
    $region8: #{tpu_custom_call.1} parent=1 // loop_exit
      _
    %728 = vsyncpa [#allocation5], 1
    %s729 = scalar_lea.sflag [#allocation5], 1
    %730 = vsyncpa %s729, 1
    %731 = vsyncpa [#allocation8], 1
    %732 = vsyncpa [#allocation6], 1
    %s733 = scalar_lea.sflag [#allocation6], 1
    %734 = vsyncpa %s733, 1

</llo_original>
